<compile_context>
chip_gen: v5e
topology: v5e:2x2
jax: 0.10.0
libtpu: 0.0.40
codegen_flags: <defaults>
</compile_context>

<pallas_src>
import jax
import jax.numpy as jnp
from jax.experimental import pallas as pl
from jax.experimental.pallas import tpu as pltpu


def latents_forward(latents: jax.Array) -> jax.Array:
    """Pallas-free forward of Latents: the parameter IS the output.

    The module's forward is a pure identity, so the optimal implementation is
    to return the parameter buffer directly (no HBM round-trip, no launch).
    """
    return latents


def _chunk_bounds(leading: int, max_chunks: int):
    """Split [0, leading) into <= max_chunks contiguous (start, size) spans."""
    n_chunks = max(1, min(max_chunks, leading))
    base, rem = divmod(leading, n_chunks)
    bounds = []
    start = 0
    for c in range(n_chunks):
        size = base + (1 if c < rem else 0)
        if size > 0:
            bounds.append((start, size))
        start += size
    return tuple(bounds)


def _make_hbm_copy_kernel(chunk_bounds):
    """Kernel factory: chunked HBM->HBM DMA copy of the whole parameter."""

    def kernel(in_hbm, out_hbm, sems):
        # Issue all chunk DMAs (kept in flight concurrently), then await all.
        copies = []
        for c, (start, size) in enumerate(chunk_bounds):
            cp = pltpu.make_async_copy(
                in_hbm.at[pl.ds(start, size)],
                out_hbm.at[pl.ds(start, size)],
                sems.at[c],
            )
            cp.start()
            copies.append(cp)
        for cp in copies:
            cp.wait()

    return kernel


def latents_forward_pallas(
    latents: jax.Array,
    *,
    force_pallas: bool = False,
    small_bytes_threshold: int = 1 << 20,   # ~1 MiB: below this, launch cost dominates
    target_chunk_bytes: int = 16 << 20,     # aim for ~16 MiB per DMA chunk
    max_outstanding_dma: int | None = None,
) -> jax.Array:
    """Materializing variant: fresh copy of the parameter via HBM->HBM DMA.

    Only use this when a fresh copy of the parameter buffer is actually needed;
    otherwise call `latents_forward` (zero-copy).
    """
    if latents.ndim == 0 or latents.size == 0:
        # Nothing worth a DMA kernel for; identity semantics are preserved.
        return latents

    nbytes = latents.size * jnp.dtype(latents.dtype).itemsize
    if not force_pallas and nbytes < small_bytes_threshold:
        # Small-array fast path: the parameter is the output.
        return latents

    leading = latents.shape[0]
    if max_outstanding_dma is None:
        # Enough chunks to keep a few DMA engines busy on multi-MiB params,
        # capped at 8 outstanding transfers.
        max_outstanding_dma = max(1, min(8, -(-nbytes // target_chunk_bytes)))
    chunk_bounds = _chunk_bounds(leading, max_outstanding_dma)

    kernel = _make_hbm_copy_kernel(chunk_bounds)

    return pl.pallas_call(
        kernel,
        out_shape=jax.ShapeDtypeStruct(latents.shape, latents.dtype),
        in_specs=[pl.BlockSpec(memory_space=pl.ANY)],
        out_specs=pl.BlockSpec(memory_space=pl.ANY),
        scratch_shapes=[pltpu.SemaphoreType.DMA((len(chunk_bounds),))],
    )(latents)


if __name__ == "__main__":
    # Deterministic "parameter" initialization (stands in for nn.Parameter(init_values)).
    key = jax.random.PRNGKey(0)
    k1, k2 = jax.random.split(key)

    # Small latent bank: 2 groups x 8 latents x hidden 32.
    small = jax.random.normal(k1, (2, 8, 32), dtype=jnp.float32)

    # Fast path (the real forward): identity return of the parameter.
    out_fast = latents_forward(small)
    assert out_fast.shape == small.shape and out_fast.dtype == small.dtype
    assert bool(jnp.array_equal(out_fast, small))

    # Pallas HBM->HBM DMA copy, forced on the small bank so the kernel runs.
    out_small = jax.block_until_ready(latents_forward_pallas(small, force_pallas=True))
    assert out_small.shape == small.shape and out_small.dtype == small.dtype
    assert bool(jnp.array_equal(out_small, small))

    # A moderately larger bank to exercise the multi-DMA (chunked) path.
    big = jax.random.normal(k2, (16, 128, 128), dtype=jnp.float32)  # 1 MiB
    out_big = jax.block_until_ready(
        latents_forward_pallas(big, force_pallas=True, max_outstanding_dma=4)
    )
    assert out_big.shape == big.shape and out_big.dtype == big.dtype
    assert bool(jnp.array_equal(out_big, big))

    print("KERNEL_OK")
</pallas_src>

<mosaic_0001>
module attributes {stable_mosaic.version = 11 : i64} {
  func.func @kernel(%arg0: memref<2x8x32xf32, #tpu.memory_space<any>>, %arg1: memref<2x8x32xf32, #tpu.memory_space<any>>, %arg2: memref<1x!tpu.dma_semaphore, #tpu.memory_space<semaphore_mem>>) attributes {dimension_semantics = [], scalar_prefetch = 0 : i64, scratch_operands = 1 : i64, tpu.core_type = #tpu.core_type<tc>} {
    %c0_i32 = arith.constant 0 : i32
    %c0_i32_0 = arith.constant 0 : i32
    %c0_i32_1 = arith.constant 0 : i32
    %c0_i32_2 = arith.constant 0 : i32
    %0 = tpu.memref_slice %arg0[%c0_i32_0, %c0_i32_1, %c0_i32_2] : memref<2x8x32xf32, #tpu.memory_space<any>> -> memref<2x8x32xf32, #tpu.memory_space<any>>
    %c0_i32_3 = arith.constant 0 : i32
    %c0_i32_4 = arith.constant 0 : i32
    %c0_i32_5 = arith.constant 0 : i32
    %1 = tpu.memref_slice %arg1[%c0_i32_3, %c0_i32_4, %c0_i32_5] : memref<2x8x32xf32, #tpu.memory_space<any>> -> memref<2x8x32xf32, #tpu.memory_space<any>>
    %2 = tpu.memref_slice %arg2[%c0_i32] : memref<1x!tpu.dma_semaphore, #tpu.memory_space<semaphore_mem>> -> memref<1x!tpu.dma_semaphore, #tpu.memory_space<semaphore_mem>>
    %3 = tpu.memref_squeeze %2 : memref<1x!tpu.dma_semaphore, #tpu.memory_space<semaphore_mem>> -> memref<!tpu.dma_semaphore, #tpu.memory_space<semaphore_mem>>
    tpu.enqueue_dma source(%0 : memref<2x8x32xf32, #tpu.memory_space<any>>) target(%1 : memref<2x8x32xf32, #tpu.memory_space<any>>) target_semaphore(%3 : memref<!tpu.dma_semaphore, #tpu.memory_space<semaphore_mem>>)
    %c0_i32_6 = arith.constant 0 : i32
    %c0_i32_7 = arith.constant 0 : i32
    %c0_i32_8 = arith.constant 0 : i32
    %c0_i32_9 = arith.constant 0 : i32
    %4 = tpu.memref_slice %arg0[%c0_i32_7, %c0_i32_8, %c0_i32_9] : memref<2x8x32xf32, #tpu.memory_space<any>> -> memref<2x8x32xf32, #tpu.memory_space<any>>
    %c0_i32_10 = arith.constant 0 : i32
    %c0_i32_11 = arith.constant 0 : i32
    %c0_i32_12 = arith.constant 0 : i32
    %5 = tpu.memref_slice %arg1[%c0_i32_10, %c0_i32_11, %c0_i32_12] : memref<2x8x32xf32, #tpu.memory_space<any>> -> memref<2x8x32xf32, #tpu.memory_space<any>>
    %6 = tpu.memref_slice %arg2[%c0_i32_6] : memref<1x!tpu.dma_semaphore, #tpu.memory_space<semaphore_mem>> -> memref<1x!tpu.dma_semaphore, #tpu.memory_space<semaphore_mem>>
    %7 = tpu.memref_squeeze %6 : memref<1x!tpu.dma_semaphore, #tpu.memory_space<semaphore_mem>> -> memref<!tpu.dma_semaphore, #tpu.memory_space<semaphore_mem>>
    tpu.wait_dma2 semaphore(%7 : memref<!tpu.dma_semaphore, #tpu.memory_space<semaphore_mem>>) src(%4 : memref<2x8x32xf32, #tpu.memory_space<any>>) dst(%5 : memref<2x8x32xf32, #tpu.memory_space<any>>)
    return
  }
}

</mosaic_0001>

<llo_original>
// kernel: tpu_custom_call.1
$region0: #{tpu_custom_call.1}
  #allocation0 [shape = 'u32[]', space=smem, size = 0x4, offset = 0x4, fixed_abs, tag = 'smem constant byte address 0x4 - core index']
  #allocation1 [shape = 'u32[72,128]{1,0:T(1,128)}', space=vmem, size = 0x9000, scoped, tag = 'internal scratch']
  #allocation2 [shape = 's32[1]{0}', space=sflag, size = 0x4, scoped, tag = 'scratch operand']
  #allocation3 [shape = 's32[]', space=sflag, size = 0x4, offset = 0, fixed_abs, tag = 'sflag constant byte address 0x0 - dummy sync flag']
  #allocation4 [shape = 'u32[0]{0}', space=smem, size = 0, offset = 0, fixed_abs, tag = 'smem constant byte address 0x0 - null']
  %s0 = inlined_call_operand.hbm [shape: f32[2,8,32], index: 0, kind: input, shape index: {}]
  %s1 = inlined_call_operand.hbm [shape: f32[2,8,32], index: 1, kind: output, shape index: {}]
  %s2 = sld [smem:[#allocation0]]
  $region2: #{tpu_custom_call.1} parent=0
    _
  %s4 = ssub.s32 1, %s2
  %s5 = scalar_select 0, %s4, %s2
  %s7 = sshll.u32 1, 14
  %s8 = sxor.u32 4294967295, %s7
  %s10 = sshll.u32 %s0, 4
  %s11 = int_to_ptr.hbm [resolvable:$true] %s10
  %s12 = sshll.u32 %s1, 4
  %s13 = int_to_ptr.hbm [resolvable:$true] %s12
  %16 = dma.general %s11, 256, %s13, [#allocation2], [#allocation3], [#allocation4], 0, 0
  %s17 = smul.u32 2, 8
  %s18 = smul.u32 %s17, 1
  %s19 = sshll.u32 %s18, 4
  %20 = dma.done [#allocation2], %s19
  %21 = vsyncmov [#allocation2]
  %s22 = vpop.sfrf %21
  %p23 = scmp.eq.s32.totalorder %s22, 0
  %p24 = pneg %p23
  %26 = shalt.err (%p24)

</llo_original>
